<compile_context>
chip_gen: v7x
topology: tpu7x:2x2x1
jax: 0.10.0
libtpu: 0.0.40
codegen_flags: <defaults>
</compile_context>

<pallas_src>
import jax
import jax.numpy as jnp
from jax.experimental import pallas as pl
from jax.experimental.pallas import tpu as pltpu


# ----------------------------------------------------------------------------- kernel
def ban_kernel(rgb_ref, txt_ref, qsum_ref,
               wimg_ref, bimg_ref,
               wvcat_ref, bvcat_ref, wqcat_ref, bqcat_ref,
               hmat_ref, hbias_ref, wp_ref, bp_ref,
               out_ref):
    TB, T, Dq = txt_ref.shape

    # ---- inputs --------------------------------------------------------------------
    rgb = rgb_ref[...].astype(jnp.bfloat16)     # f32 DMA; cast at the dot site (no extra HBM pass)
    q_bf = txt_ref[...]                         # (TB, T, Dq) bf16 text features
    q2 = q_bf.reshape(TB * T, Dq)               # merged (batch*token) rows for the matmuls

    # ---- image_text_model.encode_image: linear on the flattened NCHW image ----------
    v32 = jnp.dot(rgb, wimg_ref[...],
                  preferred_element_type=jnp.float32) + bimg_ref[...]          # (TB, Dv), V == 1
    # TODO(synk): for realistic image sizes tile this contraction over a K grid axis with a
    # VMEM accumulator (and use int8 operands on v5e/v6e, fp8 on v7x, if rgb is uint8 pixels).
    v_bf = v32.astype(jnp.bfloat16)
    # v_mask: visual rows whose encoded feature vector is all zeros
    vmask = jnp.sum(jnp.abs(v32), axis=1, keepdims=True) == 0.0                # (TB, 1)

    # ---- fused attention-net ‖ b_net matmuls (exactly 128-lane N) --------------------
    # lanes [:3h] = BiAttention BCNet (v_net / q_net); lanes [3h:] = b_net[G-1] v/q nets
    vcat = jnp.maximum(jnp.dot(v_bf, wvcat_ref[...],
                               preferred_element_type=jnp.float32) + bvcat_ref[...], 0.0)   # (TB, 128)
    qcat = jnp.maximum(jnp.dot(q2, wqcat_ref[...],
                               preferred_element_type=jnp.float32) + bqcat_ref[...], 0.0)   # (TB*T, 128)
    qcat = qcat.reshape(TB, T, -1)

    # ---- BiAttention logits + softmax over tokens (V == 1), last glimpse only --------
    vh = vcat * hmat_ref[...]                   # h_mat zero-padded on the b_net lanes
    lg = jnp.sum(qcat * vh[:, None, :], axis=2) + hbias_ref[...]               # (TB, T)
    lg = jnp.where(vmask, -1e30, lg)            # masked_fill(-inf) on all-zero visual rows
    lg = lg - jnp.max(lg, axis=1, keepdims=True)
    e = jnp.exp(lg)
    att = e * pl.reciprocal(jnp.sum(e, axis=1, keepdims=True), approx=True)    # (TB, T)

    # ---- b_net[G-1].forward_with_weights: einsum('bvk,bvq,bqk->bk'), V == 1 ----------
    # Computed over all 128 lanes; the attention-net lanes hit the zero rows of the
    # padded Wp below, so they contribute exactly 0 to the projection.
    bfull = vcat * jnp.sum(qcat * att[:, :, None], axis=1)                     # (TB, 128)

    # NOTE: `logits[:, g, :, :].max(2)` in the PyTorch loop is discarded -> omitted.

    # ---- q_prj[G-1] (FCNet, eval-mode dropout = identity) + text residual ------------
    proj = jnp.dot(bfull.astype(jnp.bfloat16), wp_ref[...],
                   preferred_element_type=jnp.float32) + bp_ref[...]           # (TB, NOUT)
    # q_emb.sum(1) with q_emb = proj[:, None, :] + text_features  ==  T*proj + text.sum(1)
    out_ref[...] = (T * proj + qsum_ref[...]).astype(out_ref.dtype)


# ------------------------------------------------------------------- load-time weight prep
def prepare_params(params):
    """One-time (load-time) weight prep — run OUTSIDE the jitted forward.

    Selects the last glimpse (the only one reaching the output), concatenates the
    attention-net and b_net weights into 128-lane-wide matrices, zero-pads h_mat / Wp /
    bp so the kernel needs no lane slicing and the output store is lane-dense, and
    casts every MXU operand to bf16 exactly once (no per-call casts).
    """
    g = params["hmat"].shape[0] - 1             # only the last glimpse reaches the output
    h3 = params["Wv_att"].shape[1]              # num_hid * k_att
    nh = params["Wp"].shape[-1]                 # num_hid
    ncat = h3 + nh                              # 128 for num_hid=32, k=3
    nout = ((nh + 127) // 128) * 128            # lane-dense output width

    bf = lambda x: jnp.asarray(x, jnp.bfloat16)
    f32 = lambda x: jnp.asarray(x, jnp.float32)

    wv_cat = jnp.concatenate([params["Wv_att"], params["Wv_b"][g]], axis=1)              # (Dv, ncat)
    bv_cat = jnp.concatenate([params["bv_att"][0], params["bv_b"][g]], axis=0)[None, :]  # (1, ncat)
    wq_cat = jnp.concatenate([params["Wq_att"], params["Wq_b"][g]], axis=1)              # (Dq, ncat)
    bq_cat = jnp.concatenate([params["bq_att"][0], params["bq_b"][g]], axis=0)[None, :]  # (1, ncat)

    hmat_pad = jnp.zeros((1, ncat), jnp.float32).at[0, :h3].set(params["hmat"][g])       # zero b_net lanes
    wp_pad = jnp.zeros((ncat, nout), jnp.float32).at[h3:h3 + nh, :nh].set(params["Wp"][g])
    bp_pad = jnp.zeros((1, nout), jnp.float32).at[0, :nh].set(params["bp"][g])

    return {
        "emb":   f32(params["emb"]),
        "Wimg":  bf(params["Wimg"]),  "bimg":  f32(params["bimg"]),
        "Wvcat": bf(wv_cat),          "bvcat": f32(bv_cat),
        "Wqcat": bf(wq_cat),          "bqcat": f32(bq_cat),
        "hmat":  f32(hmat_pad),
        "hbias": f32(params["hbias"][:, g:g + 1]),
        "Wp":    bf(wp_pad),          "bp":    f32(bp_pad),
    }


# -------------------------------------------------------- pipeline_mode=Buffered(1) probe
_BUFFERED_SINGLE_OK = None


def _single_buffer_weights_supported():
    """Probe (once) whether this Pallas build accepts pipeline_mode=pl.Buffered(1)."""
    global _BUFFERED_SINGLE_OK
    if _BUFFERED_SINGLE_OK is not None:
        return _BUFFERED_SINGLE_OK
    ok = False
    if hasattr(pl, "Buffered"):
        try:
            def _k(x_ref, o_ref):
                o_ref[...] = x_ref[...] + 1.0

            x = jnp.zeros((8, 128), jnp.float32)
            out = pl.pallas_call(
                _k,
                out_shape=jax.ShapeDtypeStruct((8, 128), jnp.float32),
                grid=(1,),
                in_specs=[pl.BlockSpec((8, 128), lambda i: (0, 0),
                                       pipeline_mode=pl.Buffered(1))],
                out_specs=pl.BlockSpec((8, 128), lambda i: (0, 0)),
            )(x)
            jax.block_until_ready(out)
            ok = True
        except Exception:   # any construction/lowering failure -> default double buffering
            ok = False
    _BUFFERED_SINGLE_OK = ok
    return ok


# ----------------------------------------------------------------------------- wrapper
def make_ban_forward(num_hid):
    # Per-generation tile / VMEM budget: bigger batch tiles amortize the ~0.35 us
    # per-grid-step overhead and fill the 256-row MXU on v5e/v6e (128 MiB VMEM);
    # stay conservative on v7x (64 MiB per TC) or unknown chips.
    kind = jax.devices()[0].device_kind.lower()
    if ("v5" in kind) or ("v6" in kind):
        tb_cap, vmem_bytes = 256, 96 * 1024 * 1024
    else:
        tb_cap, vmem_bytes = 128, 48 * 1024 * 1024
    single_buf = _single_buffer_weights_supported()

    @jax.jit
    def ban_forward(rgb, tokens, kp):
        B = rgb.shape[0]
        # NCHW row-major flatten (== torch .view(B, -1)); NO wrapper-side dtype cast —
        # the kernel reads f32 and casts to bf16 at the dot site (avoids an extra HBM pass).
        rgb_flat = rgb.reshape(B, -1)
        CHW = rgb_flat.shape[1]
        # encode_text stand-in (embedding gather = glue, left to XLA).
        q = kp["emb"][tokens]                                                  # (B, T, Dq) f32
        T, Dq = q.shape[1], q.shape[2]
        assert Dq == num_hid, "the `+ text_features` residual requires q_dim == num_hid"
        q_bf = q.astype(jnp.bfloat16)                                          # bf16 text tile (half the DMA)
        NOUT = kp["Wp"].shape[1]                                               # lane-dense output width
        qsum = jnp.pad(jnp.sum(q, axis=1), ((0, 0), (0, NOUT - num_hid)))      # (B, NOUT) f32 residual

        TB = min(B, tb_cap)
        grid = (pl.cdiv(B, TB),)

        weights = (kp["Wimg"], kp["bimg"],
                   kp["Wvcat"], kp["bvcat"], kp["Wqcat"], kp["bqcat"],
                   kp["hmat"], kp["hbias"], kp["Wp"], kp["bp"])

        def whole(a):   # full-array block, constant index -> stays VMEM-resident
            idx = lambda i, _n=a.ndim: (0,) * _n
            if single_buf:   # resident weights never change block index: single buffer is enough
                return pl.BlockSpec(a.shape, idx, pipeline_mode=pl.Buffered(1))
            return pl.BlockSpec(a.shape, idx)

        in_specs = [
            pl.BlockSpec((TB, CHW), lambda i: (i, 0)),        # rgb tile (f32)
            pl.BlockSpec((TB, T, Dq), lambda i: (i, 0, 0)),   # text tile (bf16)
            pl.BlockSpec((TB, NOUT), lambda i: (i, 0)),       # text-residual sum (f32)
        ] + [whole(a) for a in weights]

        out = pl.pallas_call(
            ban_kernel,
            out_shape=jax.ShapeDtypeStruct((B, NOUT), jnp.float32),
            grid=grid,
            in_specs=in_specs,
            out_specs=pl.BlockSpec((TB, NOUT), lambda i: (i, 0)),
            compiler_params=pltpu.CompilerParams(
                dimension_semantics=("parallel",),    # batch tiles shard across v7x's 2 TensorCores
                vmem_limit_bytes=vmem_bytes,
            ),
        )(rgb_flat, q_bf, qsum, *weights)
        return out[:, :num_hid]                       # drop the lane padding

    return ban_forward


# ----------------------------------------------------------------------------- reference
def ban_reference(rgb, tokens, params):
    """Pure-JAX f32 reference mirroring the literal PyTorch forward semantics."""
    B = rgb.shape[0]
    rgb_flat = rgb.reshape(B, -1).astype(jnp.float32)
    q = params["emb"][tokens]
    relu = lambda x: jnp.maximum(x, 0.0)
    v = rgb_flat @ params["Wimg"] + params["bimg"]
    v3 = relu(v @ params["Wv_att"] + params["bv_att"])
    q3 = relu(jnp.einsum("btd,de->bte", q, params["Wq_att"]) + params["bq_att"])
    vmask = (jnp.sum(jnp.abs(v), axis=1, keepdims=True) == 0.0)
    G = params["hmat"].shape[0]
    q_emb = q
    for g in range(G):
        lg = jnp.einsum("bk,btk->bt", v3 * params["hmat"][g], q3) + params["hbias"][0, g]
        lg = jnp.where(vmask, -1e30, lg)
        att = jax.nn.softmax(lg, axis=1)
        v_b = relu(v @ params["Wv_b"][g] + params["bv_b"][g])
        q_b = relu(jnp.einsum("btd,dh->bth", q, params["Wq_b"][g]) + params["bq_b"][g])
        b_emb = v_b * jnp.einsum("bt,bth->bh", att, q_b)
        proj = b_emb @ params["Wp"][g] + params["bp"][g]
        q_emb = proj[:, None, :] + q          # literal PyTorch: added to the ORIGINAL text features
    return jnp.sum(q_emb, axis=1)


def init_params(key, *, chw, dv, dq, nh, g, k_att, vocab):
    ks = jax.random.split(key, 16)
    n = lambda k, shape, s: (s * jax.random.normal(k, shape, dtype=jnp.float32))
    h3 = nh * k_att
    return {
        "emb":    n(ks[0], (vocab, dq), 0.10),
        "Wimg":   n(ks[1], (chw, dv), 1.0 / jnp.sqrt(chw)),
        "bimg":   n(ks[2], (1, dv), 0.01),
        "Wv_att": n(ks[3], (dv, h3), 1.0 / jnp.sqrt(dv)),
        "bv_att": n(ks[4], (1, h3), 0.01),
        "Wq_att": n(ks[5], (dq, h3), 1.0 / jnp.sqrt(dq)),
        "bq_att": n(ks[6], (1, h3), 0.01),
        "hmat":   n(ks[7], (g, h3), 1.0),     # torch .normal_()
        "hbias":  n(ks[8], (1, g), 1.0),
        "Wv_b":   n(ks[9], (g, dv, nh), 1.0 / jnp.sqrt(dv)),
        "bv_b":   n(ks[10], (g, nh), 0.01),
        "Wq_b":   n(ks[11], (g, dq, nh), 1.0 / jnp.sqrt(dq)),
        "bq_b":   n(ks[12], (g, nh), 0.01),
        "Wp":     n(ks[13], (g, nh, nh), 1.0 / jnp.sqrt(nh)),
        "bp":     n(ks[14], (g, nh), 0.01),
    }


if __name__ == "__main__":
    B, C, Hs, Ws = 2, 4, 16, 16      # batch, channels, spatial (NCHW image)
    T, VOCAB = 8, 64                 # num_tokens, vocab size
    DV = 32                          # v_dim (image feature dim)
    DQ = 32                          # text feature dim (== num_hid, required by the residual)
    NH = 32                          # num_hid (h_dim)
    G = 2                            # glimpses (cfg.fusion.gamma)
    K_ATT = 3                        # k of the BiAttention BCNet -> h_dim * 3

    key = jax.random.PRNGKey(0)
    k_img, k_tok, k_par = jax.random.split(key, 3)
    rgb = jax.random.normal(k_img, (B, C, Hs, Ws), dtype=jnp.float32)
    tokens = jax.random.randint(k_tok, (B, T), 0, VOCAB)
    params = init_params(k_par, chw=C * Hs * Ws, dv=DV, dq=DQ, nh=NH,
                         g=G, k_att=K_ATT, vocab=VOCAB)

    kernel_params = prepare_params(params)          # one-time bf16 / concat / pad prep (outside jit)
    ban_forward = make_ban_forward(NH)
    out = ban_forward(rgb, tokens, kernel_params)
    jax.block_until_ready(out)

    ref = ban_reference(rgb, tokens, params)
    assert out.shape == (B, NH), out.shape
    # Kernel feeds bf16 operands to the MXU (f32 accumulation) vs an all-f32 reference.
    assert jnp.allclose(out, ref, atol=5e-2, rtol=5e-2), (out, ref)
    print("KERNEL_OK")
</pallas_src>

<mosaic_0001>
module attributes {stable_mosaic.version = 11 : i64} {
  func.func @_k(%arg0: i32, %arg1: memref<8x128xf32, #tpu.memory_space<vmem>>, %arg2: memref<8x128xf32, #tpu.memory_space<vmem>>) attributes {dimension_semantics = [#tpu.dimension_semantics<arbitrary>], iteration_bounds = array<i64: 1>, scalar_prefetch = 0 : i64, scratch_operands = 0 : i64, tpu.core_type = #tpu.core_type<tc>, window_params = [{pipeline_mode = #tpu.pipeline_mode<synchronous>, transform_indices = @transform_0, window_bounds = array<i64: 8, 128>}, {pipeline_mode = #tpu.pipeline_mode<synchronous>, transform_indices = @transform_1, window_bounds = array<i64: 8, 128>}]} {
    %c0 = arith.constant 0 : index
    %c0_0 = arith.constant 0 : index
    %0 = vector.load %arg1[%c0, %c0_0] : memref<8x128xf32, #tpu.memory_space<vmem>>, vector<8x128xf32>
    %cst = arith.constant 1.000000e+00 : f32
    %1 = vector.broadcast %cst : f32 to vector<8x128xf32>
    %2 = arith.addf %0, %1 : vector<8x128xf32>
    %c0_1 = arith.constant 0 : index
    %c0_2 = arith.constant 0 : index
    %3 = vector.load %arg2[%c0_1, %c0_2] : memref<8x128xf32, #tpu.memory_space<vmem>>, vector<8x128xf32>
    tpu.vector_store %arg2[%c0_1, %c0_2], %2 {strides = array<i32>} : memref<8x128xf32, #tpu.memory_space<vmem>>, vector<8x128xf32>,
    return
  }
  func.func @transform_0(%arg0: i32) -> (i32, i32) {
    %c0_i32 = arith.constant 0 : i32
    %c0_i32_0 = arith.constant 0 : i32
    %c0_i32_1 = arith.constant 0 : i32
    return %c0_i32, %c0_i32_0 : i32, i32
  }
  func.func @transform_1(%arg0: i32) -> (i32, i32) {
    %c0_i32 = arith.constant 0 : i32
    %c0_i32_0 = arith.constant 0 : i32
    %c0_i32_1 = arith.constant 0 : i32
    return %c0_i32, %c0_i32_0 : i32, i32
  }
}

module attributes {stable_mosaic.version = 11 : i64} {
  func.func @ban_kernel(%arg0: i32, %arg1: memref<2x1024xf32, #tpu.memory_space<vmem>>, %arg2: memref<2x8x32xbf16, #tpu.memory_space<vmem>>, %arg3: memref<2x128xf32, #tpu.memory_space<vmem>>, %arg4: memref<1024x32xbf16, #tpu.memory_space<vmem>>, %arg5: memref<1x32xf32, #tpu.memory_space<vmem>>, %arg6: memref<32x128xbf16, #tpu.memory_space<vmem>>, %arg7: memref<1x128xf32, #tpu.memory_space<vmem>>, %arg8: memref<32x128xbf16, #tpu.memory_space<vmem>>, %arg9: memref<1x128xf32, #tpu.memory_space<vmem>>, %arg10: memref<1x128xf32, #tpu.memory_space<vmem>>, %arg11: memref<1x1xf32, #tpu.memory_space<vmem>>, %arg12: memref<128x128xbf16, #tpu.memory_space<vmem>>, %arg13: memref<1x128xf32, #tpu.memory_space<vmem>>, %arg14: memref<2x128xf32, #tpu.memory_space<vmem>>) attributes {dimension_semantics = [#tpu.dimension_semantics<parallel>], iteration_bounds = array<i64: 1>, scalar_prefetch = 0 : i64, scratch_operands = 0 : i64, tpu.core_type = #tpu.core_type<tc>, window_params = [{transform_indices = @transform_0, window_bounds = array<i64: 2, 1024>}, {transform_indices = @transform_1, window_bounds = array<i64: 2, 8, 32>}, {transform_indices = @transform_2, window_bounds = array<i64: 2, 128>}, {pipeline_mode = #tpu.pipeline_mode<synchronous>, transform_indices = @transform_3, window_bounds = array<i64: 1024, 32>}, {pipeline_mode = #tpu.pipeline_mode<synchronous>, transform_indices = @transform_4, window_bounds = array<i64: 1, 32>}, {pipeline_mode = #tpu.pipeline_mode<synchronous>, transform_indices = @transform_5, window_bounds = array<i64: 32, 128>}, {pipeline_mode = #tpu.pipeline_mode<synchronous>, transform_indices = @transform_6, window_bounds = array<i64: 1, 128>}, {pipeline_mode = #tpu.pipeline_mode<synchronous>, transform_indices = @transform_7, window_bounds = array<i64: 32, 128>}, {pipeline_mode = #tpu.pipeline_mode<synchronous>, transform_indices = @transform_8, window_bounds = array<i64: 1, 128>}, {pipeline_mode = #tpu.pipeline_mode<synchronous>, transform_indices = @transform_9, window_bounds = array<i64: 1, 128>}, {pipeline_mode = #tpu.pipeline_mode<synchronous>, transform_indices = @transform_10, window_bounds = array<i64: 1, 1>}, {pipeline_mode = #tpu.pipeline_mode<synchronous>, transform_indices = @transform_11, window_bounds = array<i64: 128, 128>}, {pipeline_mode = #tpu.pipeline_mode<synchronous>, transform_indices = @transform_12, window_bounds = array<i64: 1, 128>}, {transform_indices = @transform_13, window_bounds = array<i64: 2, 128>}]} {
    %c0 = arith.constant 0 : index
    %c0_0 = arith.constant 0 : index
    %0 = vector.load %arg1[%c0, %c0_0] : memref<2x1024xf32, #tpu.memory_space<vmem>>, vector<2x1024xf32>
    %1 = arith.truncf %0 : vector<2x1024xf32> to vector<2x1024xbf16>
    %c0_1 = arith.constant 0 : index
    %c0_2 = arith.constant 0 : index
    %c0_3 = arith.constant 0 : index
    %2 = vector.load %arg2[%c0_1, %c0_2, %c0_3] : memref<2x8x32xbf16, #tpu.memory_space<vmem>>, vector<2x8x32xbf16>
    %3 = vector.shape_cast %2 : vector<2x8x32xbf16> to vector<16x32xbf16>
    %c0_4 = arith.constant 0 : index
    %c0_5 = arith.constant 0 : index
    %4 = vector.load %arg4[%c0_4, %c0_5] : memref<1024x32xbf16, #tpu.memory_space<vmem>>, vector<1024x32xbf16>
    %cst = arith.constant dense<0.000000e+00> : vector<2x32xf32>
    %5 = tpu.matmul %1, %4, %cst {dimension_numbers = #tpu.dot_dimension_numbers<[1], [0], [0], [1], [0, 0, 1, 1], [], []>} : vector<2x1024xbf16>, vector<1024x32xbf16>, vector<2x32xf32> -> vector<2x32xf32>
    %c0_6 = arith.constant 0 : index
    %c0_7 = arith.constant 0 : index
    %6 = vector.load %arg5[%c0_6, %c0_7] : memref<1x32xf32, #tpu.memory_space<vmem>>, vector<1x32xf32>
    %7 = vector.broadcast %6 : vector<1x32xf32> to vector<2x32xf32>
    %8 = arith.addf %5, %7 : vector<2x32xf32>
    %9 = arith.truncf %8 : vector<2x32xf32> to vector<2x32xbf16>
    %10 = math.absf %8 : vector<2x32xf32>
    %cst_8 = arith.constant dense<0.000000e+00> : vector<2xf32>
    %11 = vector.multi_reduction <add>, %10, %cst_8 [1] : vector<2x32xf32> to vector<2xf32>
    %12 = vector.shape_cast %11 : vector<2xf32> to vector<2x1xf32>
    %cst_9 = arith.constant 0.000000e+00 : f32
    %13 = vector.broadcast %cst_9 : f32 to vector<2x1xf32>
    %14 = arith.cmpf oeq, %12, %13 : vector<2x1xf32>
    %c0_10 = arith.constant 0 : index
    %c0_11 = arith.constant 0 : index
    %15 = vector.load %arg6[%c0_10, %c0_11] : memref<32x128xbf16, #tpu.memory_space<vmem>>, vector<32x128xbf16>
    %cst_12 = arith.constant dense<0.000000e+00> : vector<2x128xf32>
    %16 = tpu.matmul %9, %15, %cst_12 {dimension_numbers = #tpu.dot_dimension_numbers<[1], [0], [0], [1], [0, 0, 1, 1], [], []>} : vector<2x32xbf16>, vector<32x128xbf16>, vector<2x128xf32> -> vector<2x128xf32>
    %c0_13 = arith.constant 0 : index
    %c0_14 = arith.constant 0 : index
    %17 = vector.load %arg7[%c0_13, %c0_14] : memref<1x128xf32, #tpu.memory_space<vmem>>, vector<1x128xf32>
    %18 = vector.broadcast %17 : vector<1x128xf32> to vector<2x128xf32>
    %19 = arith.addf %16, %18 : vector<2x128xf32>
    %cst_15 = arith.constant 0.000000e+00 : f32
    %20 = vector.broadcast %cst_15 : f32 to vector<2x128xf32>
    %21 = arith.maximumf %19, %20 : vector<2x128xf32>
    %c0_16 = arith.constant 0 : index
    %c0_17 = arith.constant 0 : index
    %22 = vector.load %arg8[%c0_16, %c0_17] : memref<32x128xbf16, #tpu.memory_space<vmem>>, vector<32x128xbf16>
    %cst_18 = arith.constant dense<0.000000e+00> : vector<16x128xf32>
    %23 = tpu.matmul %3, %22, %cst_18 {dimension_numbers = #tpu.dot_dimension_numbers<[1], [0], [0], [1], [0, 0, 1, 1], [], []>} : vector<16x32xbf16>, vector<32x128xbf16>, vector<16x128xf32> -> vector<16x128xf32>
    %c0_19 = arith.constant 0 : index
    %c0_20 = arith.constant 0 : index
    %24 = vector.load %arg9[%c0_19, %c0_20] : memref<1x128xf32, #tpu.memory_space<vmem>>, vector<1x128xf32>
    %25 = vector.broadcast %24 : vector<1x128xf32> to vector<16x128xf32>
    %26 = arith.addf %23, %25 : vector<16x128xf32>
    %cst_21 = arith.constant 0.000000e+00 : f32
    %27 = vector.broadcast %cst_21 : f32 to vector<16x128xf32>
    %28 = arith.maximumf %26, %27 : vector<16x128xf32>
    %29 = vector.shape_cast %28 : vector<16x128xf32> to vector<2x8x128xf32>
    %c0_22 = arith.constant 0 : index
    %c0_23 = arith.constant 0 : index
    %30 = vector.load %arg10[%c0_22, %c0_23] : memref<1x128xf32, #tpu.memory_space<vmem>>, vector<1x128xf32>
    %31 = vector.broadcast %30 : vector<1x128xf32> to vector<2x128xf32>
    %32 = arith.mulf %21, %31 : vector<2x128xf32>
    %33 = vector.shape_cast %32 : vector<2x128xf32> to vector<2x1x128xf32>
    %34 = vector.broadcast %33 : vector<2x1x128xf32> to vector<2x8x128xf32>
    %35 = arith.mulf %29, %34 : vector<2x8x128xf32>
    %cst_24 = arith.constant dense<0.000000e+00> : vector<2x8xf32>
    %36 = vector.multi_reduction <add>, %35, %cst_24 [2] : vector<2x8x128xf32> to vector<2x8xf32>
    %c0_25 = arith.constant 0 : index
    %c0_26 = arith.constant 0 : index
    %37 = vector.load %arg11[%c0_25, %c0_26] : memref<1x1xf32, #tpu.memory_space<vmem>>, vector<1x1xf32>
    %38 = vector.broadcast %37 : vector<1x1xf32> to vector<2x8xf32>
    %39 = arith.addf %36, %38 : vector<2x8xf32>
    %cst_27 = arith.constant -1.000000e+30 : f32
    %40 = vector.shape_cast %14 : vector<2x1xi1> to vector<2x1xi1>
    %41 = vector.broadcast %40 : vector<2x1xi1> to vector<2x8xi1>
    %42 = vector.broadcast %cst_27 : f32 to vector<2x8xf32>
    %43 = arith.select %41, %42, %39 : vector<2x8xi1>, vector<2x8xf32>
    %cst_28 = arith.constant dense<0xFF800000> : vector<2xf32>
    %44 = vector.multi_reduction <maximumf>, %43, %cst_28 [1] : vector<2x8xf32> to vector<2xf32>
    %45 = vector.shape_cast %44 : vector<2xf32> to vector<2x1xf32>
    %46 = vector.broadcast %45 : vector<2x1xf32> to vector<2x8xf32>
    %47 = arith.subf %43, %46 : vector<2x8xf32>
    %48 = math.exp %47 : vector<2x8xf32>
    %cst_29 = arith.constant dense<0.000000e+00> : vector<2xf32>
    %49 = vector.multi_reduction <add>, %48, %cst_29 [1] : vector<2x8xf32> to vector<2xf32>
    %50 = vector.shape_cast %49 : vector<2xf32> to vector<2x1xf32>
    %51 = tpu.reciprocal %50 {approx = true} : vector<2x1xf32> -> vector<2x1xf32>
    %52 = vector.broadcast %51 : vector<2x1xf32> to vector<2x8xf32>
    %53 = arith.mulf %48, %52 : vector<2x8xf32>
    %54 = vector.shape_cast %53 : vector<2x8xf32> to vector<2x8x1xf32>
    %55 = vector.broadcast %54 : vector<2x8x1xf32> to vector<2x8x128xf32>
    %56 = arith.mulf %29, %55 : vector<2x8x128xf32>
    %cst_30 = arith.constant dense<0.000000e+00> : vector<2x128xf32>
    %57 = vector.multi_reduction <add>, %56, %cst_30 [1] : vector<2x8x128xf32> to vector<2x128xf32>
    %58 = arith.mulf %21, %57 : vector<2x128xf32>
    %59 = arith.truncf %58 : vector<2x128xf32> to vector<2x128xbf16>
    %c0_31 = arith.constant 0 : index
    %c0_32 = arith.constant 0 : index
    %60 = vector.load %arg12[%c0_31, %c0_32] : memref<128x128xbf16, #tpu.memory_space<vmem>>, vector<128x128xbf16>
    %cst_33 = arith.constant dense<0.000000e+00> : vector<2x128xf32>
    %61 = tpu.matmul %59, %60, %cst_33 {dimension_numbers = #tpu.dot_dimension_numbers<[1], [0], [0], [1], [0, 0, 1, 1], [], []>} : vector<2x128xbf16>, vector<128x128xbf16>, vector<2x128xf32> -> vector<2x128xf32>
    %c0_34 = arith.constant 0 : index
    %c0_35 = arith.constant 0 : index
    %62 = vector.load %arg13[%c0_34, %c0_35] : memref<1x128xf32, #tpu.memory_space<vmem>>, vector<1x128xf32>
    %63 = vector.broadcast %62 : vector<1x128xf32> to vector<2x128xf32>
    %64 = arith.addf %61, %63 : vector<2x128xf32>
    %cst_36 = arith.constant 8.000000e+00 : f32
    %65 = vector.broadcast %cst_36 : f32 to vector<2x128xf32>
    %66 = arith.mulf %65, %64 : vector<2x128xf32>
    %c0_37 = arith.constant 0 : index
    %c0_38 = arith.constant 0 : index
    %67 = vector.load %arg3[%c0_37, %c0_38] : memref<2x128xf32, #tpu.memory_space<vmem>>, vector<2x128xf32>
    %68 = arith.addf %66, %67 : vector<2x128xf32>
    %c0_39 = arith.constant 0 : index
    %c0_40 = arith.constant 0 : index
    %69 = vector.load %arg14[%c0_39, %c0_40] : memref<2x128xf32, #tpu.memory_space<vmem>>, vector<2x128xf32>
    tpu.vector_store %arg14[%c0_39, %c0_40], %68 {strides = array<i32>} : memref<2x128xf32, #tpu.memory_space<vmem>>, vector<2x128xf32>,
    return
  }
  func.func @transform_0(%arg0: i32) -> (i32, i32) {
    %c0_i32 = arith.constant 0 : i32
    %c0_i32_0 = arith.constant 0 : i32
    return %arg0, %c0_i32 : i32, i32
  }
  func.func @transform_1(%arg0: i32) -> (i32, i32, i32) {
    %c0_i32 = arith.constant 0 : i32
    %c0_i32_0 = arith.constant 0 : i32
    %c0_i32_1 = arith.constant 0 : i32
    return %arg0, %c0_i32, %c0_i32_0 : i32, i32, i32
  }
  func.func @transform_2(%arg0: i32) -> (i32, i32) {
    %c0_i32 = arith.constant 0 : i32
    %c0_i32_0 = arith.constant 0 : i32
    return %arg0, %c0_i32 : i32, i32
  }
  func.func @transform_3(%arg0: i32) -> (i32, i32) {
    %c0_i32 = arith.constant 0 : i32
    %c0_i32_0 = arith.constant 0 : i32
    %c0_i32_1 = arith.constant 0 : i32
    return %c0_i32, %c0_i32_0 : i32, i32
  }
  func.func @transform_4(%arg0: i32) -> (i32, i32) {
    %c0_i32 = arith.constant 0 : i32
    %c0_i32_0 = arith.constant 0 : i32
    %c0_i32_1 = arith.constant 0 : i32
    return %c0_i32, %c0_i32_0 : i32, i32
  }
  func.func @transform_5(%arg0: i32) -> (i32, i32) {
    %c0_i32 = arith.constant 0 : i32
    %c0_i32_0 = arith.constant 0 : i32
    %c0_i32_1 = arith.constant 0 : i32
    return %c0_i32, %c0_i32_0 : i32, i32
  }
  func.func @transform_6(%arg0: i32) -> (i32, i32) {
    %c0_i32 = arith.constant 0 : i32
    %c0_i32_0 = arith.constant 0 : i32
    %c0_i32_1 = arith.constant 0 : i32
    return %c0_i32, %c0_i32_0 : i32, i32
  }
  func.func @transform_7(%arg0: i32) -> (i32, i32) {
    %c0_i32 = arith.constant 0 : i32
    %c0_i32_0 = arith.constant 0 : i32
    %c0_i32_1 = arith.constant 0 : i32
    return %c0_i32, %c0_i32_0 : i32, i32
  }
  func.func @transform_8(%arg0: i32) -> (i32, i32) {
    %c0_i32 = arith.constant 0 : i32
    %c0_i32_0 = arith.constant 0 : i32
    %c0_i32_1 = arith.constant 0 : i32
    return %c0_i32, %c0_i32_0 : i32, i32
  }
  func.func @transform_9(%arg0: i32) -> (i32, i32) {
    %c0_i32 = arith.constant 0 : i32
    %c0_i32_0 = arith.constant 0 : i32
    %c0_i32_1 = arith.constant 0 : i32
    return %c0_i32, %c0_i32_0 : i32, i32
  }
  func.func @transform_10(%arg0: i32) -> (i32, i32) {
    %c0_i32 = arith.constant 0 : i32
    %c0_i32_0 = arith.constant 0 : i32
    %c0_i32_1 = arith.constant 0 : i32
    return %c0_i32, %c0_i32_0 : i32, i32
  }
  func.func @transform_11(%arg0: i32) -> (i32, i32) {
    %c0_i32 = arith.constant 0 : i32
    %c0_i32_0 = arith.constant 0 : i32
    %c0_i32_1 = arith.constant 0 : i32
    return %c0_i32, %c0_i32_0 : i32, i32
  }
  func.func @transform_12(%arg0: i32) -> (i32, i32) {
    %c0_i32 = arith.constant 0 : i32
    %c0_i32_0 = arith.constant 0 : i32
    %c0_i32_1 = arith.constant 0 : i32
    return %c0_i32, %c0_i32_0 : i32, i32
  }
  func.func @transform_13(%arg0: i32) -> (i32, i32) {
    %c0_i32 = arith.constant 0 : i32
    %c0_i32_0 = arith.constant 0 : i32
    return %arg0, %c0_i32 : i32, i32
  }
}

</mosaic_0001>

<llo_original>
// kernel: tpu_custom_call.1
$region0: #{tpu_custom_call.1}
  #allocation0 [shape = 'u32[]', space=smem, size = 0x4, offset = 0x4, fixed_abs, tag = 'smem constant byte address 0x4 - core index']
  #allocation1 [shape = 'u32[144,128]{1,0:T(1,128)}', space=vmem, size = 0x12000, scoped, tag = 'internal scratch']
  %s0 = inlined_call_operand.hbm [shape: f32[8,128], index: 0, kind: input, shape index: {}]
  %s1 = inlined_call_operand.hbm [shape: f32[8,128], index: 1, kind: output, shape index: {}]
  %s2 = sld [smem:[#allocation0]]
  $region18: #{tpu_custom_call.1} parent=0
    _
  %s4 = ssub.s32 1, %s2
  %s5 = scalar_select 0, %s4, %s2
  $region1: #{tpu_custom_call.1} parent=0
    #allocation2 [shape = 'u8[4096]{0}', space=vmem, size = 0x1000, scoped, tag = 'input window, operand 0, single buffered']
    #allocation3 [shape = 's32[1]{0}', space=sflag, size = 0x4, scoped, tag = 'scoped memory for tpu_custom_call.1']
    #allocation4 [shape = 's32[1]{0}', space=sflag, size = 0x4, scoped, tag = 'scoped memory for tpu_custom_call.1']
    #allocation5 [shape = 'u8[4096]{0}', space=vmem, size = 0x1000, scoped, tag = 'output window, operand 0, single buffered']
    %6 = vsyncpa [#allocation3], 0
    %7 = vsyncpa [#allocation4], 0
    // Predicated region
    $region2: #{tpu_custom_call.1} parent=1 // pred_check
      _
    $region3: #{tpu_custom_call.1} parent=1 // pred_check_branch
      %9 = sbr.rel (0) target = $region5
    $region4: #{tpu_custom_call.1} parent=1 // pred_region
      %s11 = ssub.s32 128, 128
      %12 = vsyncadd [#allocation3], %s11
      %s14 = sshll.u32 [#allocation2], 4
      %s15 = int_to_ptr.vmem [resolvable:$true] %s14
      %17 = dma.hbm_to_vmem [thread:$0]  %s0, 128, %s15, [#allocation3]
    $region5: #{tpu_custom_call.1} parent=1 // pred_fallthru
      _
    // Predicated region
    $region6: #{tpu_custom_call.1} parent=1 // pred_check
      _
    $region7: #{tpu_custom_call.1} parent=1 // pred_check_branch
      %19 = sbr.rel (0) target = $region9
    $region8: #{tpu_custom_call.1} parent=1 // pred_region
      %20 = dma.done [#allocation3], 128
    $region9: #{tpu_custom_call.1} parent=1 // pred_fallthru
      _
    %v21 = vld [vmem:[#allocation2] sm:$0xff]
    %v22 = vadd.f32 %v21, 1.0
    %23 = vst [vmem:[#allocation5] sm:$0xff] %v22
    // Predicated region
    $region10: #{tpu_custom_call.1} parent=1 // pred_check
      _
    $region11: #{tpu_custom_call.1} parent=1 // pred_check_branch
      %25 = sbr.rel (0) target = $region13
    $region12: #{tpu_custom_call.1} parent=1 // pred_region
      %s27 = ssub.s32 128, 128
      %28 = vsyncadd [#allocation4], %s27
      %s30 = sshll.u32 [#allocation5], 4
      %s31 = int_to_ptr.vmem [resolvable:$true] %s30
      %33 = dma.vmem_to_hbm [thread:$0]  %s31, 128, %s1, [#allocation4]
    $region13: #{tpu_custom_call.1} parent=1 // pred_fallthru
      _
    // Predicated region
    $region14: #{tpu_custom_call.1} parent=1 // pred_check
      _
    $region15: #{tpu_custom_call.1} parent=1 // pred_check_branch
      %35 = sbr.rel (0) target = $region17
    $region16: #{tpu_custom_call.1} parent=1 // pred_region
      %36 = dma.done [#allocation4], 128
    $region17: #{tpu_custom_call.1} parent=1 // pred_fallthru
      _
    %37 = vsyncpa [#allocation3], 1
    %38 = vsyncpa [#allocation4], 1

// kernel: ban_forward.1
$region0: #{ban_forward.1}
  #allocation0 [shape = 'u32[]', space=smem, size = 0x4, offset = 0x4, fixed_abs, tag = 'smem constant byte address 0x4 - core index']
  #allocation1 [shape = 'u32[144,128]{1,0:T(1,128)}', space=vmem, size = 0x12000, scoped, tag = 'internal scratch']
  #allocation2 [shape = 'f32[1,1]{1,0:T(1,128)S(1)}', space=vmem, size = 0x200, scoped, tag = 'scoped memory for ban_forward.1']
  %s0 = inlined_call_operand.vmem [shape: f32[2,1024], index: 0, kind: input, shape index: {}]
  %s1 = inlined_call_operand.vmem [shape: bf16[2,8,32], index: 1, kind: input, shape index: {}]
  %s2 = inlined_call_operand.vmem [shape: f32[2,128], index: 2, kind: input, shape index: {}]
  %s3 = inlined_call_operand.vmem [shape: bf16[1024,32], index: 3, kind: input, shape index: {}]
  %s4 = inlined_call_operand.vmem [shape: f32[1,32], index: 4, kind: input, shape index: {}]
  %s5 = inlined_call_operand.vmem [shape: bf16[32,128], index: 5, kind: input, shape index: {}]
  %s6 = inlined_call_operand.vmem [shape: f32[1,128], index: 6, kind: input, shape index: {}]
  %s7 = inlined_call_operand.vmem [shape: bf16[32,128], index: 7, kind: input, shape index: {}]
  %s8 = inlined_call_operand.vmem [shape: f32[1,128], index: 8, kind: input, shape index: {}]
  %s9 = inlined_call_operand.vmem [shape: f32[1,128], index: 9, kind: input, shape index: {}]
  %s10 = inlined_call_operand.<no memory space> [shape: f32[1,1], index: 10, kind: input, shape index: {}]
  %s11 = inlined_call_operand.vmem [shape: bf16[128,128], index: 11, kind: input, shape index: {}]
  %s12 = inlined_call_operand.vmem [shape: f32[1,128], index: 12, kind: input, shape index: {}]
  %s13 = inlined_call_operand.hbm [shape: f32[2,128], index: 13, kind: output, shape index: {}]
  %s14 = sld [smem:[#allocation0]]
  $region62: #{ban_forward.1} parent=0
    _
  %s16 = ssub.s32 1, %s14
  %s17 = scalar_select 0, %s16, %s14
  %v18 = vstv %s10
  %19 = vst [vmem:[#allocation2] sm:$0x1] %v18
  $region1: #{ban_forward.1} parent=0
    #allocation3 [shape = 'u8[1024]{0}', space=vmem, size = 0x400, scoped, tag = 'output window, operand 0, single buffered']
    #allocation4 [shape = 's32[1]{0}', space=sflag, size = 0x4, scoped, tag = 'scoped memory for ban_forward.1']
    %20 = vsyncpa [#allocation4], 0
    // Predicated region
    $region2: #{ban_forward.1} parent=1 // pred_check
      _
    $region3: #{ban_forward.1} parent=1 // pred_check_branch
      %22 = sbr.rel (0) target = $region5
    $region4: #{ban_forward.1} parent=1 // pred_region
      _
    $region5: #{ban_forward.1} parent=1 // pred_fallthru
      _
    // Predicated region
    $region6: #{ban_forward.1} parent=1 // pred_check
      _
    $region7: #{ban_forward.1} parent=1 // pred_check_branch
      %24 = sbr.rel (0) target = $region9
    $region8: #{ban_forward.1} parent=1 // pred_region
      _
    $region9: #{ban_forward.1} parent=1 // pred_fallthru
      _
    // Predicated region
    $region10: #{ban_forward.1} parent=1 // pred_check
      _
    $region11: #{ban_forward.1} parent=1 // pred_check_branch
      %26 = sbr.rel (0) target = $region13
    $region12: #{ban_forward.1} parent=1 // pred_region
      _
    $region13: #{ban_forward.1} parent=1 // pred_fallthru
      _
    // Predicated region
    $region14: #{ban_forward.1} parent=1 // pred_check
      _
    $region15: #{ban_forward.1} parent=1 // pred_check_branch
      %28 = sbr.rel (0) target = $region17
    $region16: #{ban_forward.1} parent=1 // pred_region
      _
    $region17: #{ban_forward.1} parent=1 // pred_fallthru
      _
    // Predicated region
    $region18: #{ban_forward.1} parent=1 // pred_check
      _
    $region19: #{ban_forward.1} parent=1 // pred_check_branch
      %30 = sbr.rel (0) target = $region21
    $region20: #{ban_forward.1} parent=1 // pred_region
      _
    $region21: #{ban_forward.1} parent=1 // pred_fallthru
      _
    // Predicated region
    $region22: #{ban_forward.1} parent=1 // pred_check
      _
    $region23: #{ban_forward.1} parent=1 // pred_check_branch
      %32 = sbr.rel (0) target = $region25
    $region24: #{ban_forward.1} parent=1 // pred_region
      _
    $region25: #{ban_forward.1} parent=1 // pred_fallthru
      _
    // Predicated region
    $region26: #{ban_forward.1} parent=1 // pred_check
      _
    $region27: #{ban_forward.1} parent=1 // pred_check_branch
      %34 = sbr.rel (0) target = $region29
    $region28: #{ban_forward.1} parent=1 // pred_region
      _
    $region29: #{ban_forward.1} parent=1 // pred_fallthru
      _
    // Predicated region
    $region30: #{ban_forward.1} parent=1 // pred_check
      _
    $region31: #{ban_forward.1} parent=1 // pred_check_branch
      %36 = sbr.rel (0) target = $region33
    $region32: #{ban_forward.1} parent=1 // pred_region
      _
    $region33: #{ban_forward.1} parent=1 // pred_fallthru
      _
    // Predicated region
    $region34: #{ban_forward.1} parent=1 // pred_check
      _
    $region35: #{ban_forward.1} parent=1 // pred_check_branch
      %38 = sbr.rel (0) target = $region37
    $region36: #{ban_forward.1} parent=1 // pred_region
      _
    $region37: #{ban_forward.1} parent=1 // pred_fallthru
      _
    // Predicated region
    $region38: #{ban_forward.1} parent=1 // pred_check
      _
    $region39: #{ban_forward.1} parent=1 // pred_check_branch
      %40 = sbr.rel (0) target = $region41
    $region40: #{ban_forward.1} parent=1 // pred_region
      _
    $region41: #{ban_forward.1} parent=1 // pred_fallthru
      _
    // Predicated region
    $region42: #{ban_forward.1} parent=1 // pred_check
      _
    $region43: #{ban_forward.1} parent=1 // pred_check_branch
      %42 = sbr.rel (0) target = $region45
    $region44: #{ban_forward.1} parent=1 // pred_region
      _
    $region45: #{ban_forward.1} parent=1 // pred_fallthru
      _
    // Predicated region
    $region46: #{ban_forward.1} parent=1 // pred_check
      _
    $region47: #{ban_forward.1} parent=1 // pred_check_branch
      %44 = sbr.rel (0) target = $region49
    $region48: #{ban_forward.1} parent=1 // pred_region
      _
    $region49: #{ban_forward.1} parent=1 // pred_fallthru
      _
    // Predicated region
    $region50: #{ban_forward.1} parent=1 // pred_check
      _
    $region51: #{ban_forward.1} parent=1 // pred_check_branch
      %46 = sbr.rel (0) target = $region53
    $region52: #{ban_forward.1} parent=1 // pred_region
      _
    $region53: #{ban_forward.1} parent=1 // pred_fallthru
      _
    %v48 = vld [vmem:[%s0] sm:$0xff]
    %v49 = vld [vmem:[%s0 + $0x8] sm:$0xff]
    %v52 = vcombine.high %v48, %v48
    %v54 = vunpack.c.l.s4 1983009808
    %v55 = vunpack.c.0.s8 %v54
    %v56 = vlaneseq
    %v57 = vshrl.u32 %v56, 7
    %v58 = vsub.s32 %v55, %v57
    %v59 = vrot.slane %v48, %v58
    %v61 = vunpack.c.l.s4 1983009808
    %v62 = vunpack.c.0.s8 %v61
    %v63 = vlaneseq
    %v64 = vshrl.u32 %v63, 7
    %v65 = vsub.s32 %v62, %v64
    %v66 = vrot.slane %v52, %v65
    %v67 = vcombine.high %v59, %v59
    %v68 = vcombine.high %v66, %v66
    %v69 = vcombine.high %v49, %v49
    %v71 = vunpack.c.l.s4 1983009808
    %v72 = vunpack.c.0.s8 %v71
    %v73 = vlaneseq
    %v74 = vshrl.u32 %v73, 7
    %v75 = vsub.s32 %v72, %v74
    %v76 = vrot.slane %v49, %v75
    %v78 = vunpack.c.l.s4 1983009808
    %v79 = vunpack.c.0.s8 %v78
    %v80 = vlaneseq
    %v81 = vshrl.u32 %v80, 7
    %v82 = vsub.s32 %v79, %v81
    %v83 = vrot.slane %v69, %v82
    %v84 = vcombine.high %v76, %v76
    %v85 = vcombine.high %v83, %v83
    %v94 = vpack.c.bf16 %v59, %v59
    %v95 = vpack.c.bf16 %v67, %v67
    %v96 = vpack.c.bf16 %v66, %v66
    %v97 = vpack.c.bf16 %v68, %v68
    %v98 = vpack.c.bf16 %v76, %v76
    %v99 = vpack.c.bf16 %v84, %v84
    %v100 = vpack.c.bf16 %v83, %v83
    %v101 = vpack.c.bf16 %v85, %v85
    %v102 = vld [vmem:[%s1] sm:$0xf]
    %v103 = vld [vmem:[%s1 + $0x4] sm:$0xf]
    %v104 = vld [vmem:[%s3] sm:$0xf]
    %v105 = vld [vmem:[%s3 + $0x4] sm:$0xf]
    %v106 = vld [vmem:[%s3 + $0x8] sm:$0xf]
    %v107 = vld [vmem:[%s3 + $0xc] sm:$0xf]
    %v108 = vld [vmem:[%s3 + $0x10] sm:$0xf]
    %v109 = vld [vmem:[%s3 + $0x14] sm:$0xf]
    %v110 = vld [vmem:[%s3 + $0x18] sm:$0xf]
    %v111 = vld [vmem:[%s3 + $0x1c] sm:$0xf]
    %v112 = vld [vmem:[%s3 + $0x20] sm:$0xf]
    %v113 = vld [vmem:[%s3 + $0x24] sm:$0xf]
    %v114 = vld [vmem:[%s3 + $0x28] sm:$0xf]
    %v115 = vld [vmem:[%s3 + $0x2c] sm:$0xf]
    %v116 = vld [vmem:[%s3 + $0x30] sm:$0xf]
    %v117 = vld [vmem:[%s3 + $0x34] sm:$0xf]
    %v118 = vld [vmem:[%s3 + $0x38] sm:$0xf]
    %v119 = vld [vmem:[%s3 + $0x3c] sm:$0xf]
    %v120 = vld [vmem:[%s3 + $0x40] sm:$0xf]
    %v121 = vld [vmem:[%s3 + $0x44] sm:$0xf]
    %v122 = vld [vmem:[%s3 + $0x48] sm:$0xf]
    %v123 = vld [vmem:[%s3 + $0x4c] sm:$0xf]
    %v124 = vld [vmem:[%s3 + $0x50] sm:$0xf]
    %v125 = vld [vmem:[%s3 + $0x54] sm:$0xf]
    %v126 = vld [vmem:[%s3 + $0x58] sm:$0xf]
    %v127 = vld [vmem:[%s3 + $0x5c] sm:$0xf]
    %v128 = vld [vmem:[%s3 + $0x60] sm:$0xf]
    %v129 = vld [vmem:[%s3 + $0x64] sm:$0xf]
    %v130 = vld [vmem:[%s3 + $0x68] sm:$0xf]
    %v131 = vld [vmem:[%s3 + $0x6c] sm:$0xf]
    %v132 = vld [vmem:[%s3 + $0x70] sm:$0xf]
    %v133 = vld [vmem:[%s3 + $0x74] sm:$0xf]
    %v134 = vld [vmem:[%s3 + $0x78] sm:$0xf]
    %v135 = vld [vmem:[%s3 + $0x7c] sm:$0xf]
    %v136 = vld [vmem:[%s3 + $0x80] sm:$0xf]
    %v137 = vld [vmem:[%s3 + $0x84] sm:$0xf]
    %v138 = vld [vmem:[%s3 + $0x88] sm:$0xf]
    %v139 = vld [vmem:[%s3 + $0x8c] sm:$0xf]
    %v140 = vld [vmem:[%s3 + $0x90] sm:$0xf]
    %v141 = vld [vmem:[%s3 + $0x94] sm:$0xf]
    %v142 = vld [vmem:[%s3 + $0x98] sm:$0xf]
    %v143 = vld [vmem:[%s3 + $0x9c] sm:$0xf]
    %v144 = vld [vmem:[%s3 + $0xa0] sm:$0xf]
    %v145 = vld [vmem:[%s3 + $0xa4] sm:$0xf]
    %v146 = vld [vmem:[%s3 + $0xa8] sm:$0xf]
    %v147 = vld [vmem:[%s3 + $0xac] sm:$0xf]
    %v148 = vld [vmem:[%s3 + $0xb0] sm:$0xf]
    %v149 = vld [vmem:[%s3 + $0xb4] sm:$0xf]
    %v150 = vld [vmem:[%s3 + $0xb8] sm:$0xf]
    %v151 = vld [vmem:[%s3 + $0xbc] sm:$0xf]
    %v152 = vld [vmem:[%s3 + $0xc0] sm:$0xf]
    %v153 = vld [vmem:[%s3 + $0xc4] sm:$0xf]
    %v154 = vld [vmem:[%s3 + $0xc8] sm:$0xf]
    %v155 = vld [vmem:[%s3 + $0xcc] sm:$0xf]
    %v156 = vld [vmem:[%s3 + $0xd0] sm:$0xf]
    %v157 = vld [vmem:[%s3 + $0xd4] sm:$0xf]
    %v158 = vld [vmem:[%s3 + $0xd8] sm:$0xf]
    %v159 = vld [vmem:[%s3 + $0xdc] sm:$0xf]
    %v160 = vld [vmem:[%s3 + $0xe0] sm:$0xf]
    %v161 = vld [vmem:[%s3 + $0xe4] sm:$0xf]
    %v162 = vld [vmem:[%s3 + $0xe8] sm:$0xf]
    %v163 = vld [vmem:[%s3 + $0xec] sm:$0xf]
    %v164 = vld [vmem:[%s3 + $0xf0] sm:$0xf]
    %v165 = vld [vmem:[%s3 + $0xf4] sm:$0xf]
    %v166 = vld [vmem:[%s3 + $0xf8] sm:$0xf]
    %v167 = vld [vmem:[%s3 + $0xfc] sm:$0xf]
    %v168 = vld [vmem:[%s3 + $0x100] sm:$0xf]
    %v169 = vld [vmem:[%s3 + $0x104] sm:$0xf]
    %v170 = vld [vmem:[%s3 + $0x108] sm:$0xf]
    %v171 = vld [vmem:[%s3 + $0x10c] sm:$0xf]
    %v172 = vld [vmem:[%s3 + $0x110] sm:$0xf]
    %v173 = vld [vmem:[%s3 + $0x114] sm:$0xf]
    %v174 = vld [vmem:[%s3 + $0x118] sm:$0xf]
    %v175 = vld [vmem:[%s3 + $0x11c] sm:$0xf]
    %v176 = vld [vmem:[%s3 + $0x120] sm:$0xf]
    %v177 = vld [vmem:[%s3 + $0x124] sm:$0xf]
    %v178 = vld [vmem:[%s3 + $0x128] sm:$0xf]
    %v179 = vld [vmem:[%s3 + $0x12c] sm:$0xf]
    %v180 = vld [vmem:[%s3 + $0x130] sm:$0xf]
    %v181 = vld [vmem:[%s3 + $0x134] sm:$0xf]
    %v182 = vld [vmem:[%s3 + $0x138] sm:$0xf]
    %v183 = vld [vmem:[%s3 + $0x13c] sm:$0xf]
    %v184 = vld [vmem:[%s3 + $0x140] sm:$0xf]
    %v185 = vld [vmem:[%s3 + $0x144] sm:$0xf]
    %v186 = vld [vmem:[%s3 + $0x148] sm:$0xf]
    %v187 = vld [vmem:[%s3 + $0x14c] sm:$0xf]
    %v188 = vld [vmem:[%s3 + $0x150] sm:$0xf]
    %v189 = vld [vmem:[%s3 + $0x154] sm:$0xf]
    %v190 = vld [vmem:[%s3 + $0x158] sm:$0xf]
    %v191 = vld [vmem:[%s3 + $0x15c] sm:$0xf]
    %v192 = vld [vmem:[%s3 + $0x160] sm:$0xf]
    %v193 = vld [vmem:[%s3 + $0x164] sm:$0xf]
    %v194 = vld [vmem:[%s3 + $0x168] sm:$0xf]
    %v195 = vld [vmem:[%s3 + $0x16c] sm:$0xf]
    %v196 = vld [vmem:[%s3 + $0x170] sm:$0xf]
    %v197 = vld [vmem:[%s3 + $0x174] sm:$0xf]
    %v198 = vld [vmem:[%s3 + $0x178] sm:$0xf]
    %v199 = vld [vmem:[%s3 + $0x17c] sm:$0xf]
    %v200 = vld [vmem:[%s3 + $0x180] sm:$0xf]
    %v201 = vld [vmem:[%s3 + $0x184] sm:$0xf]
    %v202 = vld [vmem:[%s3 + $0x188] sm:$0xf]
    %v203 = vld [vmem:[%s3 + $0x18c] sm:$0xf]
    %v204 = vld [vmem:[%s3 + $0x190] sm:$0xf]
    %v205 = vld [vmem:[%s3 + $0x194] sm:$0xf]
    %v206 = vld [vmem:[%s3 + $0x198] sm:$0xf]
    %v207 = vld [vmem:[%s3 + $0x19c] sm:$0xf]
    %v208 = vld [vmem:[%s3 + $0x1a0] sm:$0xf]
    %v209 = vld [vmem:[%s3 + $0x1a4] sm:$0xf]
    %v210 = vld [vmem:[%s3 + $0x1a8] sm:$0xf]
    %v211 = vld [vmem:[%s3 + $0x1ac] sm:$0xf]
    %v212 = vld [vmem:[%s3 + $0x1b0] sm:$0xf]
    %v213 = vld [vmem:[%s3 + $0x1b4] sm:$0xf]
    %v214 = vld [vmem:[%s3 + $0x1b8] sm:$0xf]
    %v215 = vld [vmem:[%s3 + $0x1bc] sm:$0xf]
    %v216 = vld [vmem:[%s3 + $0x1c0] sm:$0xf]
    %v217 = vld [vmem:[%s3 + $0x1c4] sm:$0xf]
    %v218 = vld [vmem:[%s3 + $0x1c8] sm:$0xf]
    %v219 = vld [vmem:[%s3 + $0x1cc] sm:$0xf]
    %v220 = vld [vmem:[%s3 + $0x1d0] sm:$0xf]
    %v221 = vld [vmem:[%s3 + $0x1d4] sm:$0xf]
    %v222 = vld [vmem:[%s3 + $0x1d8] sm:$0xf]
    %v223 = vld [vmem:[%s3 + $0x1dc] sm:$0xf]
    %v224 = vld [vmem:[%s3 + $0x1e0] sm:$0xf]
    %v225 = vld [vmem:[%s3 + $0x1e4] sm:$0xf]
    %v226 = vld [vmem:[%s3 + $0x1e8] sm:$0xf]
    %v227 = vld [vmem:[%s3 + $0x1ec] sm:$0xf]
    %v228 = vld [vmem:[%s3 + $0x1f0] sm:$0xf]
    %v229 = vld [vmem:[%s3 + $0x1f4] sm:$0xf]
    %v230 = vld [vmem:[%s3 + $0x1f8] sm:$0xf]
    %v231 = vld [vmem:[%s3 + $0x1fc] sm:$0xf]
    %v232 = vld [vmem:[%s4] sm:$0x1]
    %v234 = vlaneseq
    %v235 = vshrl.u32 %v234, 7
    %v236 = vsub.s32 0, %v235
    %v237 = vrot.slane %v232, %v236
    %v367 = vunpack.c.l.b16 %v104
    %v368 = vunpack.c.l.b16 %v105
    %v369 = vunpack.c.l.b16 %v106
    %v370 = vunpack.c.l.b16 %v107
    %v371 = vunpack.c.l.b16 %v108
    %v372 = vunpack.c.l.b16 %v109
    %v373 = vunpack.c.l.b16 %v110
    %v374 = vunpack.c.l.b16 %v111
    %v375 = vunpack.c.l.b16 %v112
    %v376 = vunpack.c.l.b16 %v113
    %v377 = vunpack.c.l.b16 %v114
    %v378 = vunpack.c.l.b16 %v115
    %v379 = vunpack.c.l.b16 %v116
    %v380 = vunpack.c.l.b16 %v117
    %v381 = vunpack.c.l.b16 %v118
    %v382 = vunpack.c.l.b16 %v119
    %v383 = vunpack.c.l.b16 %v120
    %v384 = vunpack.c.l.b16 %v121
    %v385 = vunpack.c.l.b16 %v122
    %v386 = vunpack.c.l.b16 %v123
    %v387 = vunpack.c.l.b16 %v124
    %v388 = vunpack.c.l.b16 %v125
    %v389 = vunpack.c.l.b16 %v126
    %v390 = vunpack.c.l.b16 %v127
    %v391 = vunpack.c.l.b16 %v128
    %v392 = vunpack.c.l.b16 %v129
    %v393 = vunpack.c.l.b16 %v130
    %v394 = vunpack.c.l.b16 %v131
    %v395 = vunpack.c.l.b16 %v132
    %v396 = vunpack.c.l.b16 %v133
    %v397 = vunpack.c.l.b16 %v134
    %v398 = vunpack.c.l.b16 %v135
    %v399 = vunpack.c.l.b16 %v136
    %v400 = vunpack.c.l.b16 %v137
    %v401 = vunpack.c.l.b16 %v138
    %v402 = vunpack.c.l.b16 %v139
    %v403 = vunpack.c.l.b16 %v140
    %v404 = vunpack.c.l.b16 %v141
    %v405 = vunpack.c.l.b16 %v142
    %v406 = vunpack.c.l.b16 %v143
    %v407 = vunpack.c.l.b16 %v144
    %v408 = vunpack.c.l.b16 %v145
    %v409 = vunpack.c.l.b16 %v146
    %v410 = vunpack.c.l.b16 %v147
    %v411 = vunpack.c.l.b16 %v148
    %v412 = vunpack.c.l.b16 %v149
    %v413 = vunpack.c.l.b16 %v150
    %v414 = vunpack.c.l.b16 %v151
    %v415 = vunpack.c.l.b16 %v152
    %v416 = vunpack.c.l.b16 %v153
    %v417 = vunpack.c.l.b16 %v154
    %v418 = vunpack.c.l.b16 %v155
    %v419 = vunpack.c.l.b16 %v156
    %v420 = vunpack.c.l.b16 %v157
    %v421 = vunpack.c.l.b16 %v158
    %v422 = vunpack.c.l.b16 %v159
    %v423 = vunpack.c.l.b16 %v160
    %v424 = vunpack.c.l.b16 %v161
    %v425 = vunpack.c.l.b16 %v162
    %v426 = vunpack.c.l.b16 %v163
    %v427 = vunpack.c.l.b16 %v164
    %v428 = vunpack.c.l.b16 %v165
    %v429 = vunpack.c.l.b16 %v166
    %v430 = vunpack.c.l.b16 %v167
    %v431 = vunpack.c.l.b16 %v168
    %v432 = vunpack.c.l.b16 %v169
    %v433 = vunpack.c.l.b16 %v170
    %v434 = vunpack.c.l.b16 %v171
    %v435 = vunpack.c.l.b16 %v172
    %v436 = vunpack.c.l.b16 %v173
    %v437 = vunpack.c.l.b16 %v174
    %v438 = vunpack.c.l.b16 %v175
    %v439 = vunpack.c.l.b16 %v176
    %v440 = vunpack.c.l.b16 %v177
    %v441 = vunpack.c.l.b16 %v178
    %v442 = vunpack.c.l.b16 %v179
    %v443 = vunpack.c.l.b16 %v180
    %v444 = vunpack.c.l.b16 %v181
    %v445 = vunpack.c.l.b16 %v182
    %v446 = vunpack.c.l.b16 %v183
    %v447 = vunpack.c.l.b16 %v184
    %v448 = vunpack.c.l.b16 %v185
    %v449 = vunpack.c.l.b16 %v186
    %v450 = vunpack.c.l.b16 %v187
    %v451 = vunpack.c.l.b16 %v188
    %v452 = vunpack.c.l.b16 %v189
    %v453 = vunpack.c.l.b16 %v190
    %v454 = vunpack.c.l.b16 %v191
    %v455 = vunpack.c.l.b16 %v192
    %v456 = vunpack.c.l.b16 %v193
    %v457 = vunpack.c.l.b16 %v194
    %v458 = vunpack.c.l.b16 %v195
    %v459 = vunpack.c.l.b16 %v196
    %v460 = vunpack.c.l.b16 %v197
    %v461 = vunpack.c.l.b16 %v198
    %v462 = vunpack.c.l.b16 %v199
    %v463 = vunpack.c.l.b16 %v200
    %v464 = vunpack.c.l.b16 %v201
    %v465 = vunpack.c.l.b16 %v202
    %v466 = vunpack.c.l.b16 %v203
    %v467 = vunpack.c.l.b16 %v204
    %v468 = vunpack.c.l.b16 %v205
    %v469 = vunpack.c.l.b16 %v206
    %v470 = vunpack.c.l.b16 %v207
    %v471 = vunpack.c.l.b16 %v208
    %v472 = vunpack.c.l.b16 %v209
    %v473 = vunpack.c.l.b16 %v210
    %v474 = vunpack.c.l.b16 %v211
    %v475 = vunpack.c.l.b16 %v212
    %v476 = vunpack.c.l.b16 %v213
    %v477 = vunpack.c.l.b16 %v214
    %v478 = vunpack.c.l.b16 %v215
    %v479 = vunpack.c.l.b16 %v216
    %v480 = vunpack.c.l.b16 %v217
    %v481 = vunpack.c.l.b16 %v218
    %v482 = vunpack.c.l.b16 %v219
    %v483 = vunpack.c.l.b16 %v220
    %v484 = vunpack.c.l.b16 %v221
    %v485 = vunpack.c.l.b16 %v222
    %v486 = vunpack.c.l.b16 %v223
    %v487 = vunpack.c.l.b16 %v224
    %v488 = vunpack.c.l.b16 %v225
    %v489 = vunpack.c.l.b16 %v226
    %v490 = vunpack.c.l.b16 %v227
    %v491 = vunpack.c.l.b16 %v228
    %v492 = vunpack.c.l.b16 %v229
    %v493 = vunpack.c.l.b16 %v230
    %v494 = vunpack.c.l.b16 %v231
    %v495 = vpack.c.b16 %v368, %v367
    %v496 = vpack.c.b16 %v370, %v369
    %v497 = vpack.c.b16 %v372, %v371
    %v498 = vpack.c.b16 %v374, %v373
    %v499 = vpack.c.b16 %v376, %v375
    %v500 = vpack.c.b16 %v378, %v377
    %v501 = vpack.c.b16 %v380, %v379
    %v502 = vpack.c.b16 %v382, %v381
    %v503 = vpack.c.b16 %v384, %v383
    %v504 = vpack.c.b16 %v386, %v385
    %v505 = vpack.c.b16 %v388, %v387
    %v506 = vpack.c.b16 %v390, %v389
    %v507 = vpack.c.b16 %v392, %v391
    %v508 = vpack.c.b16 %v394, %v393
    %v509 = vpack.c.b16 %v396, %v395
    %v510 = vpack.c.b16 %v398, %v397
    %v511 = vpack.c.b16 %v400, %v399
    %v512 = vpack.c.b16 %v402, %v401
    %v513 = vpack.c.b16 %v404, %v403
    %v514 = vpack.c.b16 %v406, %v405
    %v515 = vpack.c.b16 %v408, %v407
    %v516 = vpack.c.b16 %v410, %v409
    %v517 = vpack.c.b16 %v412, %v411
    %v518 = vpack.c.b16 %v414, %v413
    %v519 = vpack.c.b16 %v416, %v415
    %v520 = vpack.c.b16 %v418, %v417
    %v521 = vpack.c.b16 %v420, %v419
    %v522 = vpack.c.b16 %v422, %v421
    %v523 = vpack.c.b16 %v424, %v423
    %v524 = vpack.c.b16 %v426, %v425
    %v525 = vpack.c.b16 %v428, %v427
    %v526 = vpack.c.b16 %v430, %v429
    %v527 = vpack.c.b16 %v432, %v431
    %v528 = vpack.c.b16 %v434, %v433
    %v529 = vpack.c.b16 %v436, %v435
    %v530 = vpack.c.b16 %v438, %v437
    %v531 = vpack.c.b16 %v440, %v439
    %v532 = vpack.c.b16 %v442, %v441
    %v533 = vpack.c.b16 %v444, %v443
    %v534 = vpack.c.b16 %v446, %v445
    %v535 = vpack.c.b16 %v448, %v447
    %v536 = vpack.c.b16 %v450, %v449
    %v537 = vpack.c.b16 %v452, %v451
    %v538 = vpack.c.b16 %v454, %v453
    %v539 = vpack.c.b16 %v456, %v455
    %v540 = vpack.c.b16 %v458, %v457
    %v541 = vpack.c.b16 %v460, %v459
    %v542 = vpack.c.b16 %v462, %v461
    %v543 = vpack.c.b16 %v464, %v463
    %v544 = vpack.c.b16 %v466, %v465
    %v545 = vpack.c.b16 %v468, %v467
    %v546 = vpack.c.b16 %v470, %v469
    %v547 = vpack.c.b16 %v472, %v471
    %v548 = vpack.c.b16 %v474, %v473
    %v549 = vpack.c.b16 %v476, %v475
    %v550 = vpack.c.b16 %v478, %v477
    %v551 = vpack.c.b16 %v480, %v479
    %v552 = vpack.c.b16 %v482, %v481
    %v553 = vpack.c.b16 %v484, %v483
    %v554 = vpack.c.b16 %v486, %v485
    %v555 = vpack.c.b16 %v488, %v487
    %v556 = vpack.c.b16 %v490, %v489
    %v557 = vpack.c.b16 %v492, %v491
    %v558 = vpack.c.b16 %v494, %v493
    %623 = vmatprep.subr.bf16.mxu0 0
    %624 = vmatpush1.bf16.msra.mxu0 %v495
    %625 = vmatprep.subr.bf16.mxu0 0
    %626 = vmatpush1.bf16.msra.mxu0 %v496
    %627 = vmatprep.subr.bf16.mxu0 0
    %628 = vmatpush1.bf16.msra.mxu0 %v497
    %629 = vmatprep.subr.bf16.mxu0 0
    %630 = vmatpush1.bf16.msra.mxu0 %v498
    %631 = vmatprep.subr.bf16.mxu0 0
    %632 = vmatpush1.bf16.msra.mxu0 %v499
    %633 = vmatprep.subr.bf16.mxu0 0
    %634 = vmatpush1.bf16.msra.mxu0 %v500
    %635 = vmatprep.subr.bf16.mxu0 0
    %636 = vmatpush1.bf16.msra.mxu0 %v501
    %637 = vmatprep.subr.bf16.mxu0 0
    %638 = vmatpush1.bf16.msra.mxu0 %v502
    %639 = vmatprep.subr.bf16.mxu0 0
    %640 = vmatpush1.bf16.msra.mxu0 %v503
    %641 = vmatprep.subr.bf16.mxu0 0
    %642 = vmatpush1.bf16.msra.mxu0 %v504
    %643 = vmatprep.subr.bf16.mxu0 0
    %644 = vmatpush1.bf16.msra.mxu0 %v505
    %645 = vmatprep.subr.bf16.mxu0 0
    %646 = vmatpush1.bf16.msra.mxu0 %v506
    %647 = vmatprep.subr.bf16.mxu0 0
    %648 = vmatpush1.bf16.msra.mxu0 %v507
    %649 = vmatprep.subr.bf16.mxu0 0
    %650 = vmatpush1.bf16.msra.mxu0 %v508
    %651 = vmatprep.subr.bf16.mxu0 0
    %652 = vmatpush1.bf16.msra.mxu0 %v509
    %653 = vmatprep.subr.bf16.mxu0 0
    %654 = vmatpush1.bf16.msra.mxu0 %v510
    %655 = vmatprep.mubr.bf16.mxu0 %v95
    %656 = vmatmul.mubr.bf16.gmra.mrb[0].mxu0 %v94
    %v657 = vpop.f32.mrb[0].mxu0
    %v658 = vadd.f32 %v237, %v657
    %v659 = vpop.f32.mrb[0].mxu0
    %v660 = vpop.f32.mrb[0].mxu0
    %v661 = vpop.f32.mrb[0].mxu0
    %662 = vdwg.mxu0
    %663 = vmatprep.subr.bf16.mxu0 0
    %664 = vmatpush1.bf16.msra.mxu0 %v511
    %665 = vmatprep.subr.bf16.mxu0 0
    %666 = vmatpush1.bf16.msra.mxu0 %v512
    %667 = vmatprep.subr.bf16.mxu0 0
    %668 = vmatpush1.bf16.msra.mxu0 %v513
    %669 = vmatprep.subr.bf16.mxu0 0
    %670 = vmatpush1.bf16.msra.mxu0 %v514
    %671 = vmatprep.subr.bf16.mxu0 0
    %672 = vmatpush1.bf16.msra.mxu0 %v515
    %673 = vmatprep.subr.bf16.mxu0 0
    %674 = vmatpush1.bf16.msra.mxu0 %v516
    %675 = vmatprep.subr.bf16.mxu0 0
    %676 = vmatpush1.bf16.msra.mxu0 %v517
    %677 = vmatprep.subr.bf16.mxu0 0
    %678 = vmatpush1.bf16.msra.mxu0 %v518
    %679 = vmatprep.subr.bf16.mxu0 0
    %680 = vmatpush1.bf16.msra.mxu0 %v519
    %681 = vmatprep.subr.bf16.mxu0 0
    %682 = vmatpush1.bf16.msra.mxu0 %v520
    %683 = vmatprep.subr.bf16.mxu0 0
    %684 = vmatpush1.bf16.msra.mxu0 %v521
    %685 = vmatprep.subr.bf16.mxu0 0
    %686 = vmatpush1.bf16.msra.mxu0 %v522
    %687 = vmatprep.subr.bf16.mxu0 0
    %688 = vmatpush1.bf16.msra.mxu0 %v523
    %689 = vmatprep.subr.bf16.mxu0 0
    %690 = vmatpush1.bf16.msra.mxu0 %v524
    %691 = vmatprep.subr.bf16.mxu0 0
    %692 = vmatpush1.bf16.msra.mxu0 %v525
    %693 = vmatprep.subr.bf16.mxu0 0
    %694 = vmatpush1.bf16.msra.mxu0 %v526
    %695 = vmatprep.mubr.bf16.mxu0 %v97
    %696 = vmatmul.mubr.bf16.gmra.mrb[0].mxu0 %v96
    %v697 = vpop.f32.mrb[0].mxu0
    %v698 = vadd.f32 %v658, %v697
    %v699 = vpop.f32.mrb[0].mxu0
    %v700 = vpop.f32.mrb[0].mxu0
    %v701 = vpop.f32.mrb[0].mxu0
    %702 = vdwg.mxu0
    %703 = vmatprep.subr.bf16.mxu0 0
    %704 = vmatpush1.bf16.msra.mxu0 %v527
    %705 = vmatprep.subr.bf16.mxu0 0
    %706 = vmatpush1.bf16.msra.mxu0 %v528
    %707 = vmatprep.subr.bf16.mxu0 0
    %708 = vmatpush1.bf16.msra.mxu0 %v529
    %709 = vmatprep.subr.bf16.mxu0 0
    %710 = vmatpush1.bf16.msra.mxu0 %v530
    %711 = vmatprep.subr.bf16.mxu0 0
    %712 = vmatpush1.bf16.msra.mxu0 %v531
    %713 = vmatprep.subr.bf16.mxu0 0
    %714 = vmatpush1.bf16.msra.mxu0 %v532
    %715 = vmatprep.subr.bf16.mxu0 0
    %716 = vmatpush1.bf16.msra.mxu0 %v533
    %717 = vmatprep.subr.bf16.mxu0 0
    %718 = vmatpush1.bf16.msra.mxu0 %v534
    %719 = vmatprep.subr.bf16.mxu0 0
    %720 = vmatpush1.bf16.msra.mxu0 %v535
    %721 = vmatprep.subr.bf16.mxu0 0
    %722 = vmatpush1.bf16.msra.mxu0 %v536
    %723 = vmatprep.subr.bf16.mxu0 0
    %724 = vmatpush1.bf16.msra.mxu0 %v537
    %725 = vmatprep.subr.bf16.mxu0 0
    %726 = vmatpush1.bf16.msra.mxu0 %v538
    %727 = vmatprep.subr.bf16.mxu0 0
    %728 = vmatpush1.bf16.msra.mxu0 %v539
    %729 = vmatprep.subr.bf16.mxu0 0
    %730 = vmatpush1.bf16.msra.mxu0 %v540
    %731 = vmatprep.subr.bf16.mxu0 0
    %732 = vmatpush1.bf16.msra.mxu0 %v541
    %733 = vmatprep.subr.bf16.mxu0 0
    %734 = vmatpush1.bf16.msra.mxu0 %v542
    %735 = vmatprep.mubr.bf16.mxu0 %v99
    %736 = vmatmul.mubr.bf16.gmra.mrb[0].mxu0 %v98
    %v737 = vpop.f32.mrb[0].mxu0
    %v738 = vadd.f32 %v698, %v737
    %v739 = vpop.f32.mrb[0].mxu0
    %v740 = vpop.f32.mrb[0].mxu0
    %v741 = vpop.f32.mrb[0].mxu0
    %742 = vdwg.mxu0
    %743 = vmatprep.subr.bf16.mxu0 0
    %744 = vmatpush1.bf16.msra.mxu0 %v543
    %745 = vmatprep.subr.bf16.mxu0 0
    %746 = vmatpush1.bf16.msra.mxu0 %v544
    %747 = vmatprep.subr.bf16.mxu0 0
    %748 = vmatpush1.bf16.msra.mxu0 %v545
    %749 = vmatprep.subr.bf16.mxu0 0
    %750 = vmatpush1.bf16.msra.mxu0 %v546
    %751 = vmatprep.subr.bf16.mxu0 0
    %752 = vmatpush1.bf16.msra.mxu0 %v547
    %753 = vmatprep.subr.bf16.mxu0 0
    %754 = vmatpush1.bf16.msra.mxu0 %v548
    %755 = vmatprep.subr.bf16.mxu0 0
    %756 = vmatpush1.bf16.msra.mxu0 %v549
    %757 = vmatprep.subr.bf16.mxu0 0
    %758 = vmatpush1.bf16.msra.mxu0 %v550
    %759 = vmatprep.subr.bf16.mxu0 0
    %760 = vmatpush1.bf16.msra.mxu0 %v551
    %761 = vmatprep.subr.bf16.mxu0 0
    %762 = vmatpush1.bf16.msra.mxu0 %v552
    %763 = vmatprep.subr.bf16.mxu0 0
    %764 = vmatpush1.bf16.msra.mxu0 %v553
    %765 = vmatprep.subr.bf16.mxu0 0
    %766 = vmatpush1.bf16.msra.mxu0 %v554
    %767 = vmatprep.subr.bf16.mxu0 0
    %768 = vmatpush1.bf16.msra.mxu0 %v555
    %769 = vmatprep.subr.bf16.mxu0 0
    %770 = vmatpush1.bf16.msra.mxu0 %v556
    %771 = vmatprep.subr.bf16.mxu0 0
    %772 = vmatpush1.bf16.msra.mxu0 %v557
    %773 = vmatprep.subr.bf16.mxu0 0
    %774 = vmatpush1.bf16.msra.mxu0 %v558
    %775 = vmatprep.mubr.bf16.mxu0 %v101
    %776 = vmatmul.mubr.bf16.gmra.mrb[0].mxu0 %v100
    %v777 = vpop.f32.mrb[0].mxu0
    %v778 = vadd.f32 %v738, %v777
    %v779 = vpop.f32.mrb[0].mxu0
    %v780 = vpop.f32.mrb[0].mxu0
    %v781 = vpop.f32.mrb[0].mxu0
    %782 = vdwg.mxu0
    %v783 = vpack.c.bf16 %v778, %v778
    %v784 = vand.u32 2147483647, %v778
    %vm785 = vcmask 254976
    %v786 = vsel %vm785, %v784, 0.0
    %787 = vadd.xlane.f32.xlu0 %v786
    %v788 = vpop.xlane.xlu0 %787
    %vm789 = vcmp.eq.f32.partialorder %v788, 0.0
    %v790 = vld [vmem:[%s5] sm:$0xf]
    %v791 = vld [vmem:[%s5 + $0x4] sm:$0xf]
    %v792 = vld [vmem:[%s5 + $0x8] sm:$0xf]
    %v793 = vld [vmem:[%s5 + $0xc] sm:$0xf]
    %v794 = vld [vmem:[%s6] sm:$0x1]
    %v796 = vlaneseq
    %v797 = vshrl.u32 %v796, 7
    %v798 = vsub.s32 0, %v797
    %v799 = vrot.slane %v794, %v798
    %v805 = vunpack.c.l.b16 %v790
    %v806 = vunpack.c.l.b16 %v791
    %v807 = vunpack.c.l.b16 %v792
    %v808 = vunpack.c.l.b16 %v793
    %v809 = vpack.c.b16 %v806, %v805
    %v810 = vpack.c.b16 %v808, %v807
    %vm813 = vcmask 261120
    %v815 = vsel %vm813, %v783, 0
    %817 = vmatprep.subr.bf16.mxu0 0
    %818 = vmatpush1.bf16.msra.mxu0 %v809
    %819 = vmatprep.subr.bf16.mxu0 0
    %820 = vmatpush1.bf16.msra.mxu0 %v810
    %821 = vmatprep.subr.bf16.mxu0 0
    %822 = vmatpush1.bf16.msra.mxu0 0
    %823 = vmatprep.subr.bf16.mxu0 0
    %824 = vmatpush1.bf16.msra.mxu0 0
    %825 = vmatprep.subr.bf16.mxu0 0
    %826 = vmatpush1.bf16.msra.mxu0 0
    %827 = vmatprep.subr.bf16.mxu0 0
    %828 = vmatpush1.bf16.msra.mxu0 0
    %829 = vmatprep.subr.bf16.mxu0 0
    %830 = vmatpush1.bf16.msra.mxu0 0
    %831 = vmatprep.subr.bf16.mxu0 0
    %832 = vmatpush1.bf16.msra.mxu0 0
    %833 = vmatprep.subr.bf16.mxu0 0
    %834 = vmatpush1.bf16.msra.mxu0 0
    %835 = vmatprep.subr.bf16.mxu0 0
    %836 = vmatpush1.bf16.msra.mxu0 0
    %837 = vmatprep.subr.bf16.mxu0 0
    %838 = vmatpush1.bf16.msra.mxu0 0
    %839 = vmatprep.subr.bf16.mxu0 0
    %840 = vmatpush1.bf16.msra.mxu0 0
    %841 = vmatprep.subr.bf16.mxu0 0
    %842 = vmatpush1.bf16.msra.mxu0 0
    %843 = vmatprep.subr.bf16.mxu0 0
    %844 = vmatpush1.bf16.msra.mxu0 0
    %845 = vmatprep.subr.bf16.mxu0 0
    %846 = vmatpush1.bf16.msra.mxu0 0
    %847 = vmatprep.subr.bf16.mxu0 0
    %848 = vmatpush1.bf16.msra.mxu0 0
    %849 = vmatprep.mubr.bf16.mxu0 0
    %850 = vmatmul.mubr.bf16.gmra.mrb[0].mxu0 %v815
    %v851 = vpop.f32.mrb[0].mxu0
    %v852 = vadd.f32 %v799, %v851
    %v853 = vpop.f32.mrb[0].mxu0
    %v854 = vpop.f32.mrb[0].mxu0
    %v855 = vpop.f32.mrb[0].mxu0
    %856 = vdwg.mxu0
    %v857 = vmax.f32 %v852, 0.0
    %v858 = vld [vmem:[%s7] sm:$0xf]
    %v859 = vld [vmem:[%s7 + $0x4] sm:$0xf]
    %v860 = vld [vmem:[%s7 + $0x8] sm:$0xf]
    %v861 = vld [vmem:[%s7 + $0xc] sm:$0xf]
    %v862 = vld [vmem:[%s8] sm:$0x1]
    %v864 = vlaneseq
    %v865 = vshrl.u32 %v864, 7
    %v866 = vsub.s32 0, %v865
    %v867 = vrot.slane %v862, %v866
    %v871 = vunpack.c.l.b16 %v102
    %v872 = vunpack.c.l.b16 %v103
    %v873 = vpack.c.b16 %v872, %v871
    %v878 = vunpack.c.l.b16 %v858
    %v879 = vunpack.c.l.b16 %v859
    %v880 = vunpack.c.l.b16 %v860
    %v881 = vunpack.c.l.b16 %v861
    %v882 = vpack.c.b16 %v879, %v878
    %v883 = vpack.c.b16 %v881, %v880
    %v887 = vsel %vm813, %v873, 0
    %889 = vmatprep.subr.bf16.mxu0 0
    %890 = vmatpush1.bf16.msra.mxu0 %v882
    %891 = vmatprep.subr.bf16.mxu0 0
    %892 = vmatpush1.bf16.msra.mxu0 %v883
    %893 = vmatprep.subr.bf16.mxu0 0
    %894 = vmatpush1.bf16.msra.mxu0 0
    %895 = vmatprep.subr.bf16.mxu0 0
    %896 = vmatpush1.bf16.msra.mxu0 0
    %897 = vmatprep.subr.bf16.mxu0 0
    %898 = vmatpush1.bf16.msra.mxu0 0
    %899 = vmatprep.subr.bf16.mxu0 0
    %900 = vmatpush1.bf16.msra.mxu0 0
    %901 = vmatprep.subr.bf16.mxu0 0
    %902 = vmatpush1.bf16.msra.mxu0 0
    %903 = vmatprep.subr.bf16.mxu0 0
    %904 = vmatpush1.bf16.msra.mxu0 0
    %905 = vmatprep.subr.bf16.mxu0 0
    %906 = vmatpush1.bf16.msra.mxu0 0
    %907 = vmatprep.subr.bf16.mxu0 0
    %908 = vmatpush1.bf16.msra.mxu0 0
    %909 = vmatprep.subr.bf16.mxu0 0
    %910 = vmatpush1.bf16.msra.mxu0 0
    %911 = vmatprep.subr.bf16.mxu0 0
    %912 = vmatpush1.bf16.msra.mxu0 0
    %913 = vmatprep.subr.bf16.mxu0 0
    %914 = vmatpush1.bf16.msra.mxu0 0
    %915 = vmatprep.subr.bf16.mxu0 0
    %916 = vmatpush1.bf16.msra.mxu0 0
    %917 = vmatprep.subr.bf16.mxu0 0
    %918 = vmatpush1.bf16.msra.mxu0 0
    %919 = vmatprep.subr.bf16.mxu0 0
    %920 = vmatpush1.bf16.msra.mxu0 0
    %921 = vmatprep.mubr.bf16.mxu0 0
    %922 = vmatmul.mubr.bf16.gmra.mrb[0].mxu0 %v887
    %v923 = vpop.f32.mrb[0].mxu0
    %v924 = vadd.f32 %v867, %v923
    %v925 = vpop.f32.mrb[0].mxu0
    %v926 = vpop.f32.mrb[0].mxu0
    %v927 = vadd.f32 %v867, %v926
    %v928 = vpop.f32.mrb[0].mxu0
    %929 = vdwg.mxu0
    %v930 = vmax.f32 %v924, 0.0
    %v931 = vmax.f32 %v927, 0.0
    %v932 = vld [vmem:[%s9] sm:$0x1]
    %v934 = vlaneseq
    %v935 = vshrl.u32 %v934, 7
    %v936 = vsub.s32 0, %v935
    %v937 = vrot.slane %v932, %v936
    %v939 = vmul.f32 %v857, %v937
    %v942 = vunpack.c.l.s4 1966171168
    %v943 = vunpack.c.0.s8 %v942
    %v944 = vlaneseq
    %v945 = vshrl.u32 %v944, 7
    %v946 = vsub.s32 %v943, %v945
    %v947 = vrot.slane %v939, %v946
    %v948 = vcombine.high %v947, %v947
    %v950 = vunpack.c.l.s4 1966171168
    %v951 = vunpack.c.0.s8 %v950
    %v952 = vlaneseq
    %v953 = vshrl.u32 %v952, 7
    %v954 = vsub.s32 %v951, %v953
    %v955 = vrot.slane %v947, %v954
    %v957 = vunpack.c.l.s4 1966171168
    %v958 = vunpack.c.0.s8 %v957
    %v959 = vlaneseq
    %v960 = vshrl.u32 %v959, 7
    %v961 = vsub.s32 %v958, %v960
    %v962 = vrot.slane %v948, %v961
    %v963 = vlaneseq
    %v964 = vshrl.u32 %v963, 7
    %v965 = vsub.s32 0, %v964
    %v966 = vrot.slane %v955, %v965
    %v967 = vlaneseq
    %v968 = vshrl.u32 %v967, 7
    %v969 = vsub.s32 0, %v968
    %v970 = vrot.slane %v962, %v969
    %v973 = vmul.f32 %v930, %v966
    %v974 = vmul.f32 %v931, %v970
    %975 = vadd.xlane.f32.xlu0 %v973
    %v976 = vpop.xlane.xlu0 %975
    %977 = vadd.xlane.f32.xlu0 %v974
    %v978 = vpop.xlane.xlu0 %977
    %v979 = vld [vmem:[#allocation2] sm:$0x1]
    %v981 = vlaneseq
    %v982 = vshrl.u32 %v981, 7
    %v983 = vsub.s32 0, %v982
    %v984 = vrot.slane %v979, %v983
    %985 = vset.pattern.permute.xlu0 0
    %986 = vperm.xlu0 %985, %v984
    %v987 = vpop.permute.xlu0 %986
    %v989 = vadd.f32 %v976, %v987
    %v990 = vadd.f32 %v978, %v987
    %v991 = vsel %vm789, 1, 0
    %vm992 = vcmp.eq.s32.totalorder %v991, 1
    %v995 = vlaneseq
    %v996 = vand.u32 %v995, 127
    %v997 = vlaneseq
    %v998 = vshrl.u32 %v997, 7
    %v999 = vsub.s32 %v996, %v998
    %v1000 = vrot.slane %v989, %v999
    %v1001 = vlaneseq
    %v1002 = vshrl.u32 %v1001, 7
    %v1003 = vsub.s32 %v996, %v1002
    %v1004 = vrot.slane %v990, %v1003
    %vm1005 = vcmask 1041409
    %v1006 = vsel %vm1005, %v1004, %v1000
    %v1008 = vsel %vm992, -1e+30, %v1006
    %vm1009 = vcmask 58368
    %v1010 = vsel %vm1009, %v1008, -inf
    %1011 = vmax.xlane.f32.xlu0 %v1010
    %v1012 = vpop.xlane.xlu0 %1011
    %v1013 = vsub.f32 %v1008, %v1012
    %v1014 = vmul.f32 %v1013, 1.442695
    %v1015 = vpow.pop %v1014
    %v1016 = vsel %vm1009, %v1015, 0.0
    %1017 = vadd.xlane.f32.xlu0 %v1016
    %v1018 = vpop.xlane.xlu0 %1017
    %v1019 = vrcp.pop %v1018
    %v1020 = vmul.f32 %v1015, %v1019
    %v1021 = vlaneseq
    %v1022 = vshrl.u32 %v1021, 7
    %v1023 = vsub.s32 0, %v1022
    %v1024 = vrot.slane %v1020, %v1023
    %1026 = vbcast.lane.b32.xlu0 %v1024, 256
    %v1027 = vpop.permute.xlu0 %1026
    %v1028 = vlaneseq
    %v1029 = vshrl.u32 %v1028, 7
    %v1030 = vsub.s32 1, %v1029
    %v1031 = vrot.slane %v1020, %v1030
    %1033 = vbcast.lane.b32.xlu0 %v1031, 256
    %v1034 = vpop.permute.xlu0 %1033
    %v1035 = vmul.f32 %v930, %v1027
    %v1036 = vmul.f32 %v931, %v1034
    %v1037 = vrot.slane %v1035, 4
    %v1038 = vadd.f32 %v1035, %v1037
    %v1039 = vrot.slane %v1038, 2
    %v1040 = vadd.f32 %v1038, %v1039
    %v1041 = vrot.slane %v1040, 1
    %v1042 = vadd.f32 %v1040, %v1041
    %v1043 = vrot.slane %v1036, 4
    %v1044 = vadd.f32 %v1036, %v1043
    %v1045 = vrot.slane %v1044, 2
    %v1046 = vadd.f32 %v1044, %v1045
    %v1047 = vrot.slane %v1046, 1
    %v1048 = vadd.f32 %v1046, %v1047
    %v1051 = vsel %vm1005, %v1048, %v1042
    %v1053 = vmul.f32 %v857, %v1051
    %v1054 = vpack.c.bf16 %v1053, %v1053
    %v1055 = vld [vmem:[%s11] sm:$0xf]
    %v1056 = vld [vmem:[%s11 + $0x4] sm:$0xf]
    %v1057 = vld [vmem:[%s11 + $0x8] sm:$0xf]
    %v1058 = vld [vmem:[%s11 + $0xc] sm:$0xf]
    %v1059 = vld [vmem:[%s11 + $0x10] sm:$0xf]
    %v1060 = vld [vmem:[%s11 + $0x14] sm:$0xf]
    %v1061 = vld [vmem:[%s11 + $0x18] sm:$0xf]
    %v1062 = vld [vmem:[%s11 + $0x1c] sm:$0xf]
    %v1063 = vld [vmem:[%s11 + $0x20] sm:$0xf]
    %v1064 = vld [vmem:[%s11 + $0x24] sm:$0xf]
    %v1065 = vld [vmem:[%s11 + $0x28] sm:$0xf]
    %v1066 = vld [vmem:[%s11 + $0x2c] sm:$0xf]
    %v1067 = vld [vmem:[%s11 + $0x30] sm:$0xf]
    %v1068 = vld [vmem:[%s11 + $0x34] sm:$0xf]
    %v1069 = vld [vmem:[%s11 + $0x38] sm:$0xf]
    %v1070 = vld [vmem:[%s11 + $0x3c] sm:$0xf]
    %v1071 = vld [vmem:[%s12] sm:$0x1]
    %v1073 = vlaneseq
    %v1074 = vshrl.u32 %v1073, 7
    %v1075 = vsub.s32 0, %v1074
    %v1076 = vrot.slane %v1071, %v1075
    %v1094 = vunpack.c.l.b16 %v1055
    %v1095 = vunpack.c.l.b16 %v1056
    %v1096 = vunpack.c.l.b16 %v1057
    %v1097 = vunpack.c.l.b16 %v1058
    %v1098 = vunpack.c.l.b16 %v1059
    %v1099 = vunpack.c.l.b16 %v1060
    %v1100 = vunpack.c.l.b16 %v1061
    %v1101 = vunpack.c.l.b16 %v1062
    %v1102 = vunpack.c.l.b16 %v1063
    %v1103 = vunpack.c.l.b16 %v1064
    %v1104 = vunpack.c.l.b16 %v1065
    %v1105 = vunpack.c.l.b16 %v1066
    %v1106 = vunpack.c.l.b16 %v1067
    %v1107 = vunpack.c.l.b16 %v1068
    %v1108 = vunpack.c.l.b16 %v1069
    %v1109 = vunpack.c.l.b16 %v1070
    %v1110 = vpack.c.b16 %v1095, %v1094
    %v1111 = vpack.c.b16 %v1097, %v1096
    %v1112 = vpack.c.b16 %v1099, %v1098
    %v1113 = vpack.c.b16 %v1101, %v1100
    %v1114 = vpack.c.b16 %v1103, %v1102
    %v1115 = vpack.c.b16 %v1105, %v1104
    %v1116 = vpack.c.b16 %v1107, %v1106
    %v1117 = vpack.c.b16 %v1109, %v1108
    %1126 = vmatprep.subr.bf16.mxu0 0
    %1127 = vmatpush1.bf16.msra.mxu0 %v1110
    %1128 = vmatprep.subr.bf16.mxu0 0
    %1129 = vmatpush1.bf16.msra.mxu0 %v1111
    %1130 = vmatprep.subr.bf16.mxu0 0
    %1131 = vmatpush1.bf16.msra.mxu0 %v1112
    %1132 = vmatprep.subr.bf16.mxu0 0
    %1133 = vmatpush1.bf16.msra.mxu0 %v1113
    %1134 = vmatprep.subr.bf16.mxu0 0
    %1135 = vmatpush1.bf16.msra.mxu0 %v1114
    %1136 = vmatprep.subr.bf16.mxu0 0
    %1137 = vmatpush1.bf16.msra.mxu0 %v1115
    %1138 = vmatprep.subr.bf16.mxu0 0
    %1139 = vmatpush1.bf16.msra.mxu0 %v1116
    %1140 = vmatprep.subr.bf16.mxu0 0
    %1141 = vmatpush1.bf16.msra.mxu0 %v1117
    %1142 = vmatprep.subr.bf16.mxu0 0
    %1143 = vmatpush1.bf16.msra.mxu0 0
    %1144 = vmatprep.subr.bf16.mxu0 0
    %1145 = vmatpush1.bf16.msra.mxu0 0
    %1146 = vmatprep.subr.bf16.mxu0 0
    %1147 = vmatpush1.bf16.msra.mxu0 0
    %1148 = vmatprep.subr.bf16.mxu0 0
    %1149 = vmatpush1.bf16.msra.mxu0 0
    %1150 = vmatprep.subr.bf16.mxu0 0
    %1151 = vmatpush1.bf16.msra.mxu0 0
    %1152 = vmatprep.subr.bf16.mxu0 0
    %1153 = vmatpush1.bf16.msra.mxu0 0
    %1154 = vmatprep.subr.bf16.mxu0 0
    %1155 = vmatpush1.bf16.msra.mxu0 0
    %1156 = vmatprep.subr.bf16.mxu0 0
    %1157 = vmatpush1.bf16.msra.mxu0 0
    %1158 = vmatprep.mubr.bf16.mxu0 0
    %1159 = vmatmul.mubr.bf16.gmra.mrb[0].mxu0 %v1054
    %v1160 = vpop.f32.mrb[0].mxu0
    %v1161 = vadd.f32 %v1076, %v1160
    %v1162 = vpop.f32.mrb[0].mxu0
    %v1163 = vpop.f32.mrb[0].mxu0
    %v1164 = vpop.f32.mrb[0].mxu0
    %1165 = vdwg.mxu0
    %v1166 = vmul.f32 %v1161, 8.0
    %v1167 = vld [vmem:[%s2] sm:$0x3]
    %v1168 = vadd.f32 %v1166, %v1167
    %1169 = vst [vmem:[#allocation3] sm:$0x3] %v1168
    // Predicated region
    $region54: #{ban_forward.1} parent=1 // pred_check
      _
    $region55: #{ban_forward.1} parent=1 // pred_check_branch
      %1171 = sbr.rel (0) target = $region57
    $region56: #{ban_forward.1} parent=1 // pred_region
      %s1173 = ssub.s32 32, 32
      %1174 = vsyncadd [#allocation4], %s1173
      %s1176 = sshll.u32 [#allocation3], 4
      %s1177 = int_to_ptr.vmem [resolvable:$true] %s1176
      %1179 = dma.vmem_to_hbm [thread:$0]  %s1177, 32, %s13, [#allocation4]
    $region57: #{ban_forward.1} parent=1 // pred_fallthru
      _
    // Predicated region
    $region58: #{ban_forward.1} parent=1 // pred_check
      _
    $region59: #{ban_forward.1} parent=1 // pred_check_branch
      %1181 = sbr.rel (0) target = $region61
    $region60: #{ban_forward.1} parent=1 // pred_region
      %1182 = dma.done [#allocation4], 32
    $region61: #{ban_forward.1} parent=1 // pred_fallthru
      _
    %1183 = vsyncpa [#allocation4], 1

</llo_original>
